<compile_context>
chip_gen: v7x
topology: tpu7x:2x2x1
jax: 0.10.0
libtpu: 0.0.40
codegen_flags: <defaults>
</compile_context>

<pallas_src>
import jax
import jax.numpy as jnp
import numpy as np
from jax import lax
from jax.experimental import pallas as pl
from jax.experimental.pallas import tpu as pltpu

_COS_EPS = 1e-8  # matches torch.nn.CosineSimilarity default eps


# --------------------------------------------------------------------------
# Kernel
# --------------------------------------------------------------------------
def _make_ce_loss_kernel(*, temp, in_batch_supervision, num_sent, tb, B):
    inv_temp = np.float32(1.0 / float(temp))
    eps2 = np.float32(_COS_EPS * _COS_EPS)

    def kernel(*refs):
        it = iter(refs)
        z1_ref = next(it)                       # (tb, tk)  sentence-0 row tile
        z2_ref = next(it)                       # (B, tk)   sentence-1, all rows
        z3_ref = next(it) if num_sent == 3 else None
        if in_batch_supervision:
            lab_col_ref = next(it)              # (tb, 1) int32
            lab_row_ref = next(it)              # (1, B)  int32
            neg_row_ref = next(it)              # (1, B)  int32
        o_ref = next(it)                        # (8, 128) per-row-tile partial sum
        dots12 = next(it)                       # (tb, B) f32 scratch
        rn1 = next(it)                          # (tb, 1) f32 scratch
        cn2 = next(it)                          # (1, B)  f32 scratch
        if num_sent == 3:
            dots13 = next(it)                   # (tb, B) f32 scratch
            cn3 = next(it)                      # (1, B)  f32 scratch

        # program_id/num_programs must be read at the kernel top level (NOT
        # inside pl.when bodies): inside a cond branch they have no lowering
        # on the interpret/CPU fallback path.  Close over the values instead.
        k = pl.program_id(1)
        nk = pl.num_programs(1)
        row0 = pl.program_id(0) * tb            # global row offset of this tile

        @pl.when(k == 0)
        def _init():
            dots12[...] = jnp.zeros_like(dots12)
            rn1[...] = jnp.zeros_like(rn1)
            cn2[...] = jnp.zeros_like(cn2)
            if num_sent == 3:
                dots13[...] = jnp.zeros_like(dots13)
                cn3[...] = jnp.zeros_like(cn3)

        # ---- K-slice accumulation (operands stay in native dtype) ---------
        z1 = z1_ref[...]
        z2 = z2_ref[...]
        dots12[...] += lax.dot_general(z1, z2, (((1,), (1,)), ((), ())),
                                       preferred_element_type=jnp.float32)
        z1f = z1.astype(jnp.float32)
        rn1[...] += jnp.sum(z1f * z1f, axis=-1, keepdims=True)
        ones = jnp.ones((1, z2.shape[-1]), jnp.float32)
        # Column norms accumulate in f32 (one upcast + one mul per slab).
        # Squaring in bf16 before the ones-matmul would save the upcast but
        # costs ~2^-8 relative error on the norms -> left as a profile-first
        # second-order optimization.
        z2f = z2.astype(jnp.float32)
        cn2[...] += lax.dot_general(ones, z2f * z2f, (((1,), (1,)), ((), ())),
                                    preferred_element_type=jnp.float32)
        if num_sent == 3:
            z3 = z3_ref[...]
            dots13[...] += lax.dot_general(z1, z3, (((1,), (1,)), ((), ())),
                                           preferred_element_type=jnp.float32)
            z3f = z3.astype(jnp.float32)
            cn3[...] += lax.dot_general(ones, z3f * z3f,
                                        (((1,), (1,)), ((), ())),
                                        preferred_element_type=jnp.float32)

        # ---- epilogue: cosine sim + loss terms, only at the last K tile ----
        @pl.when(k == nk - 1)
        def _epilogue():
            rn = rn1[...]
            # cos(a,b)/temp = dots * rsqrt(max(|a|^2*|b|^2, eps^2)) * (1/temp)
            inv12 = lax.rsqrt(jnp.maximum(rn * cn2[...], eps2)) * inv_temp
            sim12 = dots12[...] * inv12

            # diag mask shared by the z1-z3 weight add and CE "picked" term.
            r = lax.broadcasted_iota(jnp.int32, (tb, B), 0) + row0
            c = lax.broadcasted_iota(jnp.int32, (tb, B), 1)
            diag = r == c

            sim13 = None
            if num_sent == 3:
                inv13 = lax.rsqrt(jnp.maximum(rn * cn3[...], eps2)) * inv_temp
                sim13 = dots13[...] * inv13 + jnp.where(diag, 1.0, 0.0)

            if in_batch_supervision:
                lab_col = lab_col_ref[...]
                pospos = lab_col == lab_row_ref[...]        # bool (tb, B)
                posneg = lab_col == neg_row_ref[...]        # bool (tb, B)

                def bce_rowsum(x, y_mask):
                    v = (jnp.maximum(x, 0.0) - jnp.where(y_mask, x, 0.0)
                         + jnp.log1p(jnp.exp(-jnp.abs(x))))
                    return jnp.sum(v, axis=-1, keepdims=True)

                terms = bce_rowsum(sim12, pospos) + bce_rowsum(sim13, posneg)
            else:
                picked = jnp.sum(jnp.where(diag, sim12, 0.0), axis=-1,
                                 keepdims=True)
                m = jnp.max(sim12, axis=-1, keepdims=True)
                if num_sent == 3:
                    m = jnp.maximum(m, jnp.max(sim13, axis=-1, keepdims=True))
                    se = (jnp.sum(jnp.exp(sim12 - m), axis=-1, keepdims=True)
                          + jnp.sum(jnp.exp(sim13 - m), axis=-1, keepdims=True))
                else:
                    se = jnp.sum(jnp.exp(sim12 - m), axis=-1, keepdims=True)
                terms = m + jnp.log(se) - picked            # (tb, 1)

            # Reduce the per-row terms to one partial sum for this row tile
            # and store it as a fully aligned, lane-dense (8, 128) tile (no
            # masked 1-lane stores).  The final mean happens in XLA.
            psum = jnp.sum(terms, axis=0, keepdims=True)    # (1, 1)
            o_ref[...] = jnp.broadcast_to(psum, (8, 128))

    return kernel


# --------------------------------------------------------------------------
# Tiling heuristics (generation-aware, all defensive)
# --------------------------------------------------------------------------
def _round_up(x, m):
    return (x + m - 1) // m * m


def _num_tensorcores():
    """2 on megacore parts (v4/v5p/v7x), else 1; conservative default 1."""
    try:
        dev = jax.devices()[0]
        if dev.platform != "tpu":
            return 1
        kind = dev.device_kind.lower()
        if "v7" in kind or "v4" in kind or "v5p" in kind:
            return 2
    except Exception:
        pass
    return 1


def _vmem_capacity_bytes():
    try:
        return int(pltpu.get_tpu_info().vmem_capacity_bytes)
    except Exception:
        return 64 << 20          # conservative: v7x per-TensorCore physical VMEM


def _pick_row_tile(B, num_cores, num_sent, vmem_cap):
    """Row (batch) tile.

    Single-TC chips: whole batch in one row tile so z2/z3 stream from HBM
    exactly once.  Megacore chips: split exactly 2-way (one tile per core).
    Shrink further only if the (tb, B) f32 dot scratch would not fit.
    """
    tb = B
    if num_cores >= 2 and B % 2 == 0 and (B // 2) % 8 == 0:
        tb = B // 2
    budget = max(vmem_cap // 3, 8 << 20)
    Bp = max(_round_up(B, 128), 128)
    while (tb > 8 and (num_sent - 1) * tb * Bp * 4 > budget
           and tb % 2 == 0 and (tb // 2) % 8 == 0 and B % (tb // 2) == 0):
        tb //= 2
    return tb


def _pick_k_tile(D, rows, itemsize, vmem_cap):
    """Hidden-dim tile: always tile (nk >= 2, ideally 4-8) when D allows so
    BlockSpec pipelining overlaps DMA with MXU work; prefer multiples of 256
    (256-deep MXU on v6e/v7x), 128 only if D forces it; keep double-buffered
    input blocks within ~half the VMEM budget."""
    if D < 256 or D % 128 != 0:
        return D
    budget = max(vmem_cap // 2, 12 << 20)
    cands = [t for t in (2048, 1024, 512, 256) if D % t == 0 and D // t >= 2]
    if not cands:
        cands = [128]

    def fits(t):
        return 2 * rows * t * itemsize <= budget

    for t in cands:                      # biggest tile that still gives nk >= 4
        if D // t >= 4 and fits(t):
            return t
    for t in cands:                      # else biggest tile that gives nk >= 2
        if fits(t):
            return t
    return cands[-1]


def _vmem_limit_bytes(B, tb, tk, itemsize, num_sent, in_sup, capacity):
    Bp = max(_round_up(B, 128), 128)
    rows = tb + (num_sent - 1) * B
    inputs = 2 * rows * tk * itemsize                 # double-buffered inputs
    if in_sup:
        inputs += 2 * (tb * 128 + 2 * 8 * Bp) * 4     # padded int32 label tiles
    out = 2 * 8 * 128 * 4
    scratch = (tb * Bp + 8 * 128 + 8 * Bp) * 4        # dots12 + rn1 + cn2 (padded)
    if num_sent == 3:
        scratch += (tb * Bp + 8 * Bp) * 4             # dots13 + cn3
    est = inputs + out + scratch + (8 << 20)          # + compiler-internal slack
    # Generation-aware cap: ~112 MiB on 128 MiB parts, 16 MiB headroom on
    # 64 MiB/TC v7x, never below 32 MiB.
    cap = max(32 << 20, min(capacity - (16 << 20), 112 << 20))
    return int(min(max(est, 16 << 20), cap))


def _feature_inputs(features, B, num_sent, tb, tk, use_3d_specs):
    """Operands + BlockSpecs that deliver z1 (row tile) / z2 / z3 slabs."""
    if use_3d_specs:
        # Select the sentence with a squeezed middle BlockSpec dim: no
        # wrapper-side slicing copies; the DMA does a 2-D strided read.
        args = [features, features]
        specs = [pl.BlockSpec((tb, None, tk), lambda i, k: (i, 0, k)),
                 pl.BlockSpec((B, None, tk), lambda i, k: (0, 1, k))]
        if num_sent == 3:
            args.append(features)
            specs.append(pl.BlockSpec((B, None, tk), lambda i, k: (0, 2, k)))
    else:
        # Fallback (extra HBM copies) if the squeezed-middle-dim spec is not
        # supported by the installed Pallas version.
        args = [features[:, 0, :], features[:, 1, :]]
        specs = [pl.BlockSpec((tb, tk), lambda i, k: (i, k)),
                 pl.BlockSpec((B, tk), lambda i, k: (0, k))]
        if num_sent == 3:
            args.append(features[:, 2, :])
            specs.append(pl.BlockSpec((B, tk), lambda i, k: (0, k)))
    return args, specs


# --------------------------------------------------------------------------
# Wrapper
# --------------------------------------------------------------------------
def ce_loss(features, labels, neg_labels, *, temp, in_batch_supervision):
    """Pallas implementation of CELoss.forward (single-device path)."""
    B, num_sent, D = features.shape
    assert num_sent in (2, 3), "kernel supports num_sent in {2, 3}"
    if in_batch_supervision:
        assert num_sent == 3, "BCE path requires num_sent == 3 (as in PyTorch)"

    itemsize = jnp.dtype(features.dtype).itemsize
    num_cores = _num_tensorcores()
    vmem_cap = _vmem_capacity_bytes()

    tb = _pick_row_tile(B, num_cores, num_sent, vmem_cap)
    rows = tb + (num_sent - 1) * B
    tk = _pick_k_tile(D, rows, itemsize, vmem_cap)
    ni, nk = B // tb, D // tk

    label_args, label_specs = [], []
    if in_batch_supervision:
        label_args = [labels.reshape(B, 1).astype(jnp.int32),
                      labels.reshape(1, B).astype(jnp.int32),
                      neg_labels.reshape(1, B).astype(jnp.int32)]
        label_specs = [pl.BlockSpec((tb, 1), lambda i, k: (i, 0)),
                       pl.BlockSpec((1, B), lambda i, k: (0, 0)),
                       pl.BlockSpec((1, B), lambda i, k: (0, 0))]

    scratch = [pltpu.VMEM((tb, B), jnp.float32),   # dots(z1, z2) accumulator
               pltpu.VMEM((tb, 1), jnp.float32),   # ||z1||^2 per row
               pltpu.VMEM((1, B), jnp.float32)]    # ||z2||^2 per column
    if num_sent == 3:
        scratch += [pltpu.VMEM((tb, B), jnp.float32),   # dots(z1, z3)
                    pltpu.VMEM((1, B), jnp.float32)]    # ||z3||^2 per column

    kernel = _make_ce_loss_kernel(
        temp=float(temp), in_batch_supervision=bool(in_batch_supervision),
        num_sent=int(num_sent), tb=tb, B=B)

    cparams = pltpu.CompilerParams(
        dimension_semantics=("parallel", "arbitrary"),
        vmem_limit_bytes=_vmem_limit_bytes(B, tb, tk, itemsize, num_sent,
                                           in_batch_supervision, vmem_cap))

    def _call(use_3d_specs):
        feat_args, feat_specs = _feature_inputs(features, B, num_sent, tb, tk,
                                                use_3d_specs)
        return pl.pallas_call(
            kernel,
            out_shape=jax.ShapeDtypeStruct((ni, 8, 128), jnp.float32),
            grid_spec=pltpu.PrefetchScalarGridSpec(
                num_scalar_prefetch=0,
                grid=(ni, nk),
                in_specs=feat_specs + label_specs,
                out_specs=pl.BlockSpec((None, 8, 128), lambda i, k: (i, 0, 0)),
                scratch_shapes=scratch),
            compiler_params=cparams,
        )(*feat_args, *label_args)

    try:
        partial = _call(use_3d_specs=True)
    except Exception:
        # Fallback for Pallas versions rejecting the squeezed middle dim.
        partial = _call(use_3d_specs=False)

    denom = (B * 2 * B) if in_batch_supervision else B
    return jnp.sum(partial[:, 0, 0]) / denom


# TODO(synk): torch.distributed all_gather branch not implemented; this kernel
# covers the single-process path (dist.is_initialized() == False).


# --------------------------------------------------------------------------
# Pure-JAX reference (mirrors the PyTorch forward)
# --------------------------------------------------------------------------
def ce_loss_ref(features, labels, neg_labels, *, temp, in_batch_supervision):
    B, num_sent, _ = features.shape
    z1, z2 = features[:, 0], features[:, 1]

    def sim(a, b):
        dots = jnp.einsum("id,jd->ij", a, b,
                          precision=jax.lax.Precision.HIGHEST)
        denom = jnp.sqrt(jnp.maximum(
            jnp.sum(a * a, -1, keepdims=True) * jnp.sum(b * b, -1)[None, :],
            _COS_EPS ** 2))
        return dots / denom / temp

    cos_sim = sim(z1, z2)
    if num_sent == 3:
        z3 = features[:, 2]
        cos_sim = jnp.concatenate([cos_sim, sim(z1, z3) + jnp.eye(B)], axis=1)

    if in_batch_supervision:
        y = jnp.concatenate(
            [(labels[:, None] == labels[None, :]),
             (labels[:, None] == neg_labels[None, :])],
            axis=1).astype(jnp.float32)
        x = cos_sim
        l = jnp.maximum(x, 0.0) - x * y + jnp.log1p(jnp.exp(-jnp.abs(x)))
        return jnp.mean(l)
    else:
        lse = jax.scipy.special.logsumexp(cos_sim, axis=-1)
        return jnp.mean(lse - cos_sim[jnp.arange(B), jnp.arange(B)])


if __name__ == "__main__":
    key = jax.random.PRNGKey(0)
    B, num_sent, D = 8, 3, 32
    kf, kl, kn = jax.random.split(key, 3)
    features = jax.random.normal(kf, (B, num_sent, D), jnp.float32)
    labels = jax.random.randint(kl, (B,), 0, 4, dtype=jnp.int32)
    neg_labels = jax.random.randint(kn, (B,), 0, 4, dtype=jnp.int32)
    temp = 0.05

    # CrossEntropyLoss path (in_batch_supervision=False, num_sent=3)
    loss_ce = jax.block_until_ready(
        ce_loss(features, labels, neg_labels, temp=temp,
                in_batch_supervision=False))
    # BCEWithLogitsLoss path (in_batch_supervision=True)
    loss_bce = jax.block_until_ready(
        ce_loss(features, labels, neg_labels, temp=temp,
                in_batch_supervision=True))
    # CrossEntropyLoss path with num_sent=2 (no z3 stream at all)
    loss_ce2 = jax.block_until_ready(
        ce_loss(features[:, :2, :], labels, neg_labels, temp=temp,
                in_batch_supervision=False))

    np.testing.assert_allclose(
        np.asarray(loss_ce),
        np.asarray(ce_loss_ref(features, labels, neg_labels, temp=temp,
                               in_batch_supervision=False)),
        rtol=1e-3, atol=1e-3)
    np.testing.assert_allclose(
        np.asarray(loss_bce),
        np.asarray(ce_loss_ref(features, labels, neg_labels, temp=temp,
                               in_batch_supervision=True)),
        rtol=1e-3, atol=1e-3)
    np.testing.assert_allclose(
        np.asarray(loss_ce2),
        np.asarray(ce_loss_ref(features[:, :2, :], labels, neg_labels,
                               temp=temp, in_batch_supervision=False)),
        rtol=1e-3, atol=1e-3)

    print("KERNEL_OK")
</pallas_src>

<mosaic_0001>
module attributes {stable_mosaic.version = 11 : i64} {
  func.func @kernel(%arg0: i32, %arg1: i32, %arg2: memref<8x32xf32, #tpu.memory_space<vmem>>, %arg3: memref<8x32xf32, #tpu.memory_space<vmem>>, %arg4: memref<8x32xf32, #tpu.memory_space<vmem>>, %arg5: memref<1x8x128xf32, #tpu.memory_space<vmem>>, %arg6: memref<8x8xf32, #tpu.memory_space<vmem>>, %arg7: memref<8x1xf32, #tpu.memory_space<vmem>>, %arg8: memref<1x8xf32, #tpu.memory_space<vmem>>, %arg9: memref<8x8xf32, #tpu.memory_space<vmem>>, %arg10: memref<1x8xf32, #tpu.memory_space<vmem>>) attributes {dimension_semantics = [#tpu.dimension_semantics<parallel>, #tpu.dimension_semantics<arbitrary>], iteration_bounds = array<i64: 1, 1>, scalar_prefetch = 0 : i64, scratch_operands = 5 : i64, tpu.core_type = #tpu.core_type<tc>, window_params = [{transform_indices = @transform_0, window_bounds = array<i64: 8, 32>}, {transform_indices = @transform_1, window_bounds = array<i64: 8, 32>}, {transform_indices = @transform_2, window_bounds = array<i64: 8, 32>}, {transform_indices = @transform_3, window_bounds = array<i64: 1, 8, 128>}]} {
    %c8_i32 = arith.constant 8 : i32
    %0 = arith.muli %arg0, %c8_i32 : i32
    %c0_i32 = arith.constant 0 : i32
    %1 = arith.cmpi eq, %arg1, %c0_i32 : i32
    %2 = arith.extui %1 : i1 to i32
    %c0_i32_0 = arith.constant 0 : i32
    %3 = arith.cmpi ne, %2, %c0_i32_0 : i32
    scf.if %3 {
      %cst_33 = arith.constant 0.000000e+00 : f32
      %35 = vector.broadcast %cst_33 : f32 to vector<8x8xf32>
      %c0_34 = arith.constant 0 : index
      %c0_35 = arith.constant 0 : index
      %36 = vector.load %arg6[%c0_34, %c0_35] : memref<8x8xf32, #tpu.memory_space<vmem>>, vector<8x8xf32>
      tpu.vector_store %arg6[%c0_34, %c0_35], %35 {strides = array<i32>} : memref<8x8xf32, #tpu.memory_space<vmem>>, vector<8x8xf32>,
      %cst_36 = arith.constant 0.000000e+00 : f32
      %37 = vector.broadcast %cst_36 : f32 to vector<8x1xf32>
      %c0_37 = arith.constant 0 : index
      %c0_38 = arith.constant 0 : index
      %38 = vector.load %arg7[%c0_37, %c0_38] : memref<8x1xf32, #tpu.memory_space<vmem>>, vector<8x1xf32>
      tpu.vector_store %arg7[%c0_37, %c0_38], %37 {strides = array<i32>} : memref<8x1xf32, #tpu.memory_space<vmem>>, vector<8x1xf32>,
      %cst_39 = arith.constant 0.000000e+00 : f32
      %39 = vector.broadcast %cst_39 : f32 to vector<1x8xf32>
      %c0_40 = arith.constant 0 : index
      %c0_41 = arith.constant 0 : index
      %40 = vector.load %arg8[%c0_40, %c0_41] : memref<1x8xf32, #tpu.memory_space<vmem>>, vector<1x8xf32>
      tpu.vector_store %arg8[%c0_40, %c0_41], %39 {strides = array<i32>} : memref<1x8xf32, #tpu.memory_space<vmem>>, vector<1x8xf32>,
      %cst_42 = arith.constant 0.000000e+00 : f32
      %41 = vector.broadcast %cst_42 : f32 to vector<8x8xf32>
      %c0_43 = arith.constant 0 : index
      %c0_44 = arith.constant 0 : index
      %42 = vector.load %arg9[%c0_43, %c0_44] : memref<8x8xf32, #tpu.memory_space<vmem>>, vector<8x8xf32>
      tpu.vector_store %arg9[%c0_43, %c0_44], %41 {strides = array<i32>} : memref<8x8xf32, #tpu.memory_space<vmem>>, vector<8x8xf32>,
      %cst_45 = arith.constant 0.000000e+00 : f32
      %43 = vector.broadcast %cst_45 : f32 to vector<1x8xf32>
      %c0_46 = arith.constant 0 : index
      %c0_47 = arith.constant 0 : index
      %44 = vector.load %arg10[%c0_46, %c0_47] : memref<1x8xf32, #tpu.memory_space<vmem>>, vector<1x8xf32>
      tpu.vector_store %arg10[%c0_46, %c0_47], %43 {strides = array<i32>} : memref<1x8xf32, #tpu.memory_space<vmem>>, vector<1x8xf32>,
    } else {
    }
    %c0 = arith.constant 0 : index
    %c0_1 = arith.constant 0 : index
    %4 = vector.load %arg2[%c0, %c0_1] : memref<8x32xf32, #tpu.memory_space<vmem>>, vector<8x32xf32>
    %c0_2 = arith.constant 0 : index
    %c0_3 = arith.constant 0 : index
    %5 = vector.load %arg3[%c0_2, %c0_3] : memref<8x32xf32, #tpu.memory_space<vmem>>, vector<8x32xf32>
    %c0_4 = arith.constant 0 : index
    %c0_5 = arith.constant 0 : index
    %6 = vector.load %arg6[%c0_4, %c0_5] : memref<8x8xf32, #tpu.memory_space<vmem>>, vector<8x8xf32>
    %cst = arith.constant dense<0.000000e+00> : vector<8x8xf32>
    %7 = tpu.matmul %4, %5, %cst {dimension_numbers = #tpu.dot_dimension_numbers<[1], [1], [0], [0], [0, 0, 1, 0], [], []>} : vector<8x32xf32>, vector<8x32xf32>, vector<8x8xf32> -> vector<8x8xf32>
    %8 = arith.addf %6, %7 : vector<8x8xf32>
    %c0_6 = arith.constant 0 : index
    %c0_7 = arith.constant 0 : index
    %9 = vector.load %arg6[%c0_6, %c0_7] : memref<8x8xf32, #tpu.memory_space<vmem>>, vector<8x8xf32>
    tpu.vector_store %arg6[%c0_6, %c0_7], %8 {strides = array<i32>} : memref<8x8xf32, #tpu.memory_space<vmem>>, vector<8x8xf32>,
    %c0_8 = arith.constant 0 : index
    %c0_9 = arith.constant 0 : index
    %10 = vector.load %arg7[%c0_8, %c0_9] : memref<8x1xf32, #tpu.memory_space<vmem>>, vector<8x1xf32>
    %11 = arith.mulf %4, %4 : vector<8x32xf32>
    %cst_10 = arith.constant dense<0.000000e+00> : vector<8xf32>
    %12 = vector.multi_reduction <add>, %11, %cst_10 [1] : vector<8x32xf32> to vector<8xf32>
    %13 = vector.shape_cast %12 : vector<8xf32> to vector<8x1xf32>
    %14 = arith.addf %10, %13 : vector<8x1xf32>
    %c0_11 = arith.constant 0 : index
    %c0_12 = arith.constant 0 : index
    %15 = vector.load %arg7[%c0_11, %c0_12] : memref<8x1xf32, #tpu.memory_space<vmem>>, vector<8x1xf32>
    tpu.vector_store %arg7[%c0_11, %c0_12], %14 {strides = array<i32>} : memref<8x1xf32, #tpu.memory_space<vmem>>, vector<8x1xf32>,
    %cst_13 = arith.constant 1.000000e+00 : f32
    %16 = vector.broadcast %cst_13 : f32 to vector<1x32xf32>
    %c0_14 = arith.constant 0 : index
    %c0_15 = arith.constant 0 : index
    %17 = vector.load %arg8[%c0_14, %c0_15] : memref<1x8xf32, #tpu.memory_space<vmem>>, vector<1x8xf32>
    %18 = arith.mulf %5, %5 : vector<8x32xf32>
    %cst_16 = arith.constant dense<0.000000e+00> : vector<1x8xf32>
    %19 = tpu.matmul %16, %18, %cst_16 {dimension_numbers = #tpu.dot_dimension_numbers<[1], [1], [0], [0], [0, 0, 1, 0], [], []>} : vector<1x32xf32>, vector<8x32xf32>, vector<1x8xf32> -> vector<1x8xf32>
    %20 = arith.addf %17, %19 : vector<1x8xf32>
    %c0_17 = arith.constant 0 : index
    %c0_18 = arith.constant 0 : index
    %21 = vector.load %arg8[%c0_17, %c0_18] : memref<1x8xf32, #tpu.memory_space<vmem>>, vector<1x8xf32>
    tpu.vector_store %arg8[%c0_17, %c0_18], %20 {strides = array<i32>} : memref<1x8xf32, #tpu.memory_space<vmem>>, vector<1x8xf32>,
    %c0_19 = arith.constant 0 : index
    %c0_20 = arith.constant 0 : index
    %22 = vector.load %arg4[%c0_19, %c0_20] : memref<8x32xf32, #tpu.memory_space<vmem>>, vector<8x32xf32>
    %c0_21 = arith.constant 0 : index
    %c0_22 = arith.constant 0 : index
    %23 = vector.load %arg9[%c0_21, %c0_22] : memref<8x8xf32, #tpu.memory_space<vmem>>, vector<8x8xf32>
    %cst_23 = arith.constant dense<0.000000e+00> : vector<8x8xf32>
    %24 = tpu.matmul %4, %22, %cst_23 {dimension_numbers = #tpu.dot_dimension_numbers<[1], [1], [0], [0], [0, 0, 1, 0], [], []>} : vector<8x32xf32>, vector<8x32xf32>, vector<8x8xf32> -> vector<8x8xf32>
    %25 = arith.addf %23, %24 : vector<8x8xf32>
    %c0_24 = arith.constant 0 : index
    %c0_25 = arith.constant 0 : index
    %26 = vector.load %arg9[%c0_24, %c0_25] : memref<8x8xf32, #tpu.memory_space<vmem>>, vector<8x8xf32>
    tpu.vector_store %arg9[%c0_24, %c0_25], %25 {strides = array<i32>} : memref<8x8xf32, #tpu.memory_space<vmem>>, vector<8x8xf32>,
    %c0_26 = arith.constant 0 : index
    %c0_27 = arith.constant 0 : index
    %27 = vector.load %arg10[%c0_26, %c0_27] : memref<1x8xf32, #tpu.memory_space<vmem>>, vector<1x8xf32>
    %28 = arith.mulf %22, %22 : vector<8x32xf32>
    %cst_28 = arith.constant dense<0.000000e+00> : vector<1x8xf32>
    %29 = tpu.matmul %16, %28, %cst_28 {dimension_numbers = #tpu.dot_dimension_numbers<[1], [1], [0], [0], [0, 0, 1, 0], [], []>} : vector<1x32xf32>, vector<8x32xf32>, vector<1x8xf32> -> vector<1x8xf32>
    %30 = arith.addf %27, %29 : vector<1x8xf32>
    %c0_29 = arith.constant 0 : index
    %c0_30 = arith.constant 0 : index
    %31 = vector.load %arg10[%c0_29, %c0_30] : memref<1x8xf32, #tpu.memory_space<vmem>>, vector<1x8xf32>
    tpu.vector_store %arg10[%c0_29, %c0_30], %30 {strides = array<i32>} : memref<1x8xf32, #tpu.memory_space<vmem>>, vector<1x8xf32>,
    %c0_i32_31 = arith.constant 0 : i32
    %32 = arith.cmpi eq, %arg1, %c0_i32_31 : i32
    %33 = arith.extui %32 : i1 to i32
    %c0_i32_32 = arith.constant 0 : i32
    %34 = arith.cmpi ne, %33, %c0_i32_32 : i32
    scf.if %34 {
      %c0_33 = arith.constant 0 : index
      %c0_34 = arith.constant 0 : index
      %35 = vector.load %arg7[%c0_33, %c0_34] : memref<8x1xf32, #tpu.memory_space<vmem>>, vector<8x1xf32>
      %c0_35 = arith.constant 0 : index
      %c0_36 = arith.constant 0 : index
      %36 = vector.load %arg8[%c0_35, %c0_36] : memref<1x8xf32, #tpu.memory_space<vmem>>, vector<1x8xf32>
      %37 = vector.broadcast %35 : vector<8x1xf32> to vector<8x8xf32>
      %38 = vector.broadcast %36 : vector<1x8xf32> to vector<8x8xf32>
      %39 = arith.mulf %37, %38 : vector<8x8xf32>
      %cst_37 = arith.constant 1.000000e-16 : f32
      %40 = vector.broadcast %cst_37 : f32 to vector<8x8xf32>
      %41 = arith.maximumf %39, %40 : vector<8x8xf32>
      %42 = math.rsqrt %41 : vector<8x8xf32>
      %cst_38 = arith.constant 2.000000e+01 : f32
      %43 = vector.broadcast %cst_38 : f32 to vector<8x8xf32>
      %44 = arith.mulf %42, %43 : vector<8x8xf32>
      %c0_39 = arith.constant 0 : index
      %c0_40 = arith.constant 0 : index
      %45 = vector.load %arg6[%c0_39, %c0_40] : memref<8x8xf32, #tpu.memory_space<vmem>>, vector<8x8xf32>
      %46 = arith.mulf %45, %44 : vector<8x8xf32>
      %47 = tpu.iota {dimensions = array<i32: 0>} : vector<8x8xi32>
      %48 = vector.broadcast %0 : i32 to vector<8x8xi32>
      %49 = arith.addi %47, %48 : vector<8x8xi32>
      %50 = tpu.iota {dimensions = array<i32: 1>} : vector<8x8xi32>
      %51 = arith.cmpi eq, %49, %50 : vector<8x8xi32>
      %c0_41 = arith.constant 0 : index
      %c0_42 = arith.constant 0 : index
      %52 = vector.load %arg10[%c0_41, %c0_42] : memref<1x8xf32, #tpu.memory_space<vmem>>, vector<1x8xf32>
      %53 = vector.broadcast %35 : vector<8x1xf32> to vector<8x8xf32>
      %54 = vector.broadcast %52 : vector<1x8xf32> to vector<8x8xf32>
      %55 = arith.mulf %53, %54 : vector<8x8xf32>
      %cst_43 = arith.constant 1.000000e-16 : f32
      %56 = vector.broadcast %cst_43 : f32 to vector<8x8xf32>
      %57 = arith.maximumf %55, %56 : vector<8x8xf32>
      %58 = math.rsqrt %57 : vector<8x8xf32>
      %cst_44 = arith.constant 2.000000e+01 : f32
      %59 = vector.broadcast %cst_44 : f32 to vector<8x8xf32>
      %60 = arith.mulf %58, %59 : vector<8x8xf32>
      %c0_45 = arith.constant 0 : index
      %c0_46 = arith.constant 0 : index
      %61 = vector.load %arg9[%c0_45, %c0_46] : memref<8x8xf32, #tpu.memory_space<vmem>>, vector<8x8xf32>
      %62 = arith.mulf %61, %60 : vector<8x8xf32>
      %cst_47 = arith.constant 1.000000e+00 : f32
      %cst_48 = arith.constant 0.000000e+00 : f32
      %63 = vector.broadcast %cst_47 : f32 to vector<8x8xf32>
      %64 = vector.broadcast %cst_48 : f32 to vector<8x8xf32>
      %65 = arith.select %51, %63, %64 : vector<8x8xi1>, vector<8x8xf32>
      %66 = arith.addf %62, %65 : vector<8x8xf32>
      %cst_49 = arith.constant 0.000000e+00 : f32
      %67 = vector.broadcast %cst_49 : f32 to vector<8x8xf32>
      %68 = arith.select %51, %46, %67 : vector<8x8xi1>, vector<8x8xf32>
      %cst_50 = arith.constant dense<0.000000e+00> : vector<8xf32>
      %69 = vector.multi_reduction <add>, %68, %cst_50 [1] : vector<8x8xf32> to vector<8xf32>
      %70 = vector.shape_cast %69 : vector<8xf32> to vector<8x1xf32>
      %cst_51 = arith.constant dense<0xFF800000> : vector<8xf32>
      %71 = vector.multi_reduction <maximumf>, %46, %cst_51 [1] : vector<8x8xf32> to vector<8xf32>
      %72 = vector.shape_cast %71 : vector<8xf32> to vector<8x1xf32>
      %cst_52 = arith.constant dense<0xFF800000> : vector<8xf32>
      %73 = vector.multi_reduction <maximumf>, %66, %cst_52 [1] : vector<8x8xf32> to vector<8xf32>
      %74 = vector.shape_cast %73 : vector<8xf32> to vector<8x1xf32>
      %75 = arith.maximumf %72, %74 : vector<8x1xf32>
      %76 = vector.broadcast %75 : vector<8x1xf32> to vector<8x8xf32>
      %77 = arith.subf %46, %76 : vector<8x8xf32>
      %78 = math.exp %77 : vector<8x8xf32>
      %cst_53 = arith.constant dense<0.000000e+00> : vector<8xf32>
      %79 = vector.multi_reduction <add>, %78, %cst_53 [1] : vector<8x8xf32> to vector<8xf32>
      %80 = vector.shape_cast %79 : vector<8xf32> to vector<8x1xf32>
      %81 = vector.broadcast %75 : vector<8x1xf32> to vector<8x8xf32>
      %82 = arith.subf %66, %81 : vector<8x8xf32>
      %83 = math.exp %82 : vector<8x8xf32>
      %cst_54 = arith.constant dense<0.000000e+00> : vector<8xf32>
      %84 = vector.multi_reduction <add>, %83, %cst_54 [1] : vector<8x8xf32> to vector<8xf32>
      %85 = vector.shape_cast %84 : vector<8xf32> to vector<8x1xf32>
      %86 = arith.addf %80, %85 : vector<8x1xf32>
      %87 = math.log %86 : vector<8x1xf32>
      %88 = arith.addf %75, %87 : vector<8x1xf32>
      %89 = arith.subf %88, %70 : vector<8x1xf32>
      %cst_55 = arith.constant dense<0.000000e+00> : vector<1xf32>
      %90 = vector.multi_reduction <add>, %89, %cst_55 [0] : vector<8x1xf32> to vector<1xf32>
      %91 = vector.shape_cast %90 : vector<1xf32> to vector<1x1xf32>
      %92 = vector.shape_cast %91 : vector<1x1xf32> to vector<1x1xf32>
      %93 = vector.broadcast %92 : vector<1x1xf32> to vector<8x128xf32>
      %c0_56 = arith.constant 0 : index
      %c0_57 = arith.constant 0 : index
      %c0_58 = arith.constant 0 : index
      %94 = vector.load %arg5[%c0_56, %c0_57, %c0_58] : memref<1x8x128xf32, #tpu.memory_space<vmem>>, vector<1x8x128xf32>
      %95 = vector.shape_cast %94 : vector<1x8x128xf32> to vector<8x128xf32>
      %96 = vector.shape_cast %93 : vector<8x128xf32> to vector<1x8x128xf32>
      tpu.vector_store %arg5[%c0_56, %c0_57, %c0_58], %96 {strides = array<i32>} : memref<1x8x128xf32, #tpu.memory_space<vmem>>, vector<1x8x128xf32>,
    } else {
    }
    return
  }
  func.func @transform_0(%arg0: i32, %arg1: i32) -> (i32, i32) {
    %c0_i32 = arith.constant 0 : i32
    return %arg0, %arg1 : i32, i32
  }
  func.func @transform_1(%arg0: i32, %arg1: i32) -> (i32, i32) {
    %c0_i32 = arith.constant 0 : i32
    %c0_i32_0 = arith.constant 0 : i32
    return %c0_i32, %arg1 : i32, i32
  }
  func.func @transform_2(%arg0: i32, %arg1: i32) -> (i32, i32) {
    %c0_i32 = arith.constant 0 : i32
    %c0_i32_0 = arith.constant 0 : i32
    return %c0_i32, %arg1 : i32, i32
  }
  func.func @transform_3(%arg0: i32, %arg1: i32) -> (i32, i32, i32) {
    %c0_i32 = arith.constant 0 : i32
    %c0_i32_0 = arith.constant 0 : i32
    %c0_i32_1 = arith.constant 0 : i32
    return %arg0, %c0_i32, %c0_i32_0 : i32, i32, i32
  }
}

</mosaic_0001>

<llo_original>
// kernel: tpu_custom_call.1
$region0: #{tpu_custom_call.1}
  #allocation0 [shape = 'u32[]', space=smem, size = 0x4, offset = 0x4, fixed_abs, tag = 'smem constant byte address 0x4 - core index']
  #allocation1 [shape = 'u32[144,128]{1,0:T(1,128)}', space=vmem, size = 0x12000, scoped, tag = 'internal scratch']
  #allocation2 [shape = 'f32[8,8]{1,0:T(8,128)}', space=vmem, size = 0x1000, scoped, tag = 'scratch operand']
  #allocation3 [shape = 'f32[8,1]{1,0:T(8,128)}', space=vmem, size = 0x1000, scoped, tag = 'scratch operand']
  #allocation4 [shape = 'f32[1,8]{1,0:T(1,128)}', space=vmem, size = 0x200, scoped, tag = 'scratch operand']
  #allocation5 [shape = 'f32[8,8]{1,0:T(8,128)}', space=vmem, size = 0x1000, scoped, tag = 'scratch operand']
  #allocation6 [shape = 'f32[1,8]{1,0:T(1,128)}', space=vmem, size = 0x200, scoped, tag = 'scratch operand']
  %s0 = inlined_call_operand.hbm [shape: f32[8,32], index: 0, kind: input, shape index: {}]
  %s1 = inlined_call_operand.hbm [shape: f32[8,32], index: 1, kind: input, shape index: {}]
  %s2 = inlined_call_operand.hbm [shape: f32[8,32], index: 2, kind: input, shape index: {}]
  %s3 = inlined_call_operand.hbm [shape: f32[1,8,128], index: 3, kind: output, shape index: {}]
  %s4 = sld [smem:[#allocation0]]
  $region42: #{tpu_custom_call.1} parent=0
    _
  %s6 = ssub.s32 1, %s4
  %s7 = scalar_select 0, %s6, %s4
  $region1: #{tpu_custom_call.1} parent=0
    #allocation7 [shape = 'u8[4096]{0}', space=vmem, size = 0x1000, scoped, tag = 'input window, operand 0, single buffered']
    #allocation8 [shape = 's32[1]{0}', space=sflag, size = 0x4, scoped, tag = 'scoped memory for tpu_custom_call.1']
    #allocation9 [shape = 's32[1]{0}', space=sflag, size = 0x4, scoped, tag = 'scoped memory for tpu_custom_call.1']
    #allocation10 [shape = 'u8[4096]{0}', space=vmem, size = 0x1000, scoped, tag = 'input window, operand 1, single buffered']
    #allocation11 [shape = 's32[1]{0}', space=sflag, size = 0x4, scoped, tag = 'scoped memory for tpu_custom_call.1']
    #allocation12 [shape = 'u8[4096]{0}', space=vmem, size = 0x1000, scoped, tag = 'input window, operand 2, single buffered']
    #allocation13 [shape = 'u8[4096]{0}', space=vmem, size = 0x1000, scoped, tag = 'output window, operand 0, single buffered']
    %8 = vsyncpa [#allocation8], 0
    %9 = vsyncpa [#allocation11], 0
    %10 = vsyncpa [#allocation9], 0
    // Predicated region
    $region2: #{tpu_custom_call.1} parent=1 // pred_check
      _
    $region3: #{tpu_custom_call.1} parent=1 // pred_check_branch
      %12 = sbr.rel (0) target = $region5
    $region4: #{tpu_custom_call.1} parent=1 // pred_region
      %s14 = ssub.s32 128, 128
      %15 = vsyncadd [#allocation8], %s14
      %s17 = sshll.u32 [#allocation7], 4
      %s18 = int_to_ptr.vmem [resolvable:$true] %s17
      %20 = dma.hbm_to_vmem [thread:$0]  %s0, 128, %s18, [#allocation8]
    $region5: #{tpu_custom_call.1} parent=1 // pred_fallthru
      _
    // Predicated region
    $region6: #{tpu_custom_call.1} parent=1 // pred_check
      _
    $region7: #{tpu_custom_call.1} parent=1 // pred_check_branch
      %22 = sbr.rel (0) target = $region9
    $region8: #{tpu_custom_call.1} parent=1 // pred_region
      %s24 = ssub.s32 128, 128
      %25 = vsyncadd [#allocation11], %s24
      %s27 = sshll.u32 [#allocation10], 4
      %s28 = int_to_ptr.vmem [resolvable:$true] %s27
      %30 = dma.hbm_to_vmem [thread:$0]  %s1, 128, %s28, [#allocation11]
    $region9: #{tpu_custom_call.1} parent=1 // pred_fallthru
      _
    // Predicated region
    $region10: #{tpu_custom_call.1} parent=1 // pred_check
      _
    $region11: #{tpu_custom_call.1} parent=1 // pred_check_branch
      %32 = sbr.rel (0) target = $region13
    $region12: #{tpu_custom_call.1} parent=1 // pred_region
      %s34 = ssub.s32 128, 128
      %35 = vsyncadd [#allocation11], %s34
      %s37 = sshll.u32 [#allocation12], 4
      %s38 = int_to_ptr.vmem [resolvable:$true] %s37
      %40 = dma.hbm_to_vmem [thread:$0]  %s2, 128, %s38, [#allocation11]
    $region13: #{tpu_custom_call.1} parent=1 // pred_fallthru
      _
    // Predicated region
    $region14: #{tpu_custom_call.1} parent=1 // pred_check
      _
    $region15: #{tpu_custom_call.1} parent=1 // pred_check_branch
      %42 = sbr.rel (0) target = $region17
    $region16: #{tpu_custom_call.1} parent=1 // pred_region
      %43 = dma.done [#allocation8], 128
    $region17: #{tpu_custom_call.1} parent=1 // pred_fallthru
      _
    // Predicated region
    $region18: #{tpu_custom_call.1} parent=1 // pred_check
      _
    $region19: #{tpu_custom_call.1} parent=1 // pred_check_branch
      %45 = sbr.rel (0) target = $region21
    $region20: #{tpu_custom_call.1} parent=1 // pred_region
      %46 = dma.done [#allocation11], 128
    $region21: #{tpu_custom_call.1} parent=1 // pred_fallthru
      _
    // Predicated region
    $region22: #{tpu_custom_call.1} parent=1 // pred_check
      _
    $region23: #{tpu_custom_call.1} parent=1 // pred_check_branch
      %48 = sbr.rel (0) target = $region25
    $region24: #{tpu_custom_call.1} parent=1 // pred_region
      %49 = dma.done [#allocation11], 128
    $region25: #{tpu_custom_call.1} parent=1 // pred_fallthru
      _
    %s50 = smul.u32 0, 8
    %p51 = scmp.eq.s32.totalorder 0, 0
    // Predicated region
    $region26: #{tpu_custom_call.1} parent=1 // pred_check
      %p52 = pneg %p51
    $region27: #{tpu_custom_call.1} parent=1 // pred_check_branch
      %54 = sbr.rel (%p52) target = $region29
    $region28: #{tpu_custom_call.1} parent=1 // pred_region
      %vm55 = vcmask 64512
      %56 = vst.msk [vmem:[#allocation2] sm:$0xff] %vm55, 0.0
      %vm57 = vcmask 7168
      %58 = vst.msk [vmem:[#allocation3] sm:$0xff] %vm57, 0.0
      %vm59 = vcmask 57344
      %60 = vst.msk [vmem:[#allocation4] sm:$0x1] %vm59, 0.0
      %61 = vst.msk [vmem:[#allocation5] sm:$0xff] %vm55, 0.0
      %62 = vst.msk [vmem:[#allocation6] sm:$0x1] %vm59, 0.0
    $region29: #{tpu_custom_call.1} parent=1 // pred_fallthru
      _
    %v63 = vld [vmem:[#allocation7] sm:$0xff]
    %v64 = vld [vmem:[#allocation10] sm:$0xff]
    %v65 = vld [vmem:[#allocation2] sm:$0xff]
    %vm66 = vcmask 261120
    %v68 = vsel %vm66, %v63, 0
    %v71 = vsel %vm66, %v64, 0
    %73 = vmatprep.subr.mxu0 0.0
    %74 = vmatpush1.xpose.msra.mxu0 %v71
    %75 = vmatprep.subr.mxu0 0.0
    %76 = vmatpush1.xpose.msra.mxu0 0.0
    %77 = vmatprep.subr.mxu0 0.0
    %78 = vmatpush1.xpose.msra.mxu0 0.0
    %79 = vmatprep.subr.mxu0 0.0
    %80 = vmatpush1.xpose.msra.mxu0 0.0
    %81 = vmatprep.subr.mxu0 0.0
    %82 = vmatpush1.xpose.msra.mxu0 0.0
    %83 = vmatprep.subr.mxu0 0.0
    %84 = vmatpush1.xpose.msra.mxu0 0.0
    %85 = vmatprep.subr.mxu0 0.0
    %86 = vmatpush1.xpose.msra.mxu0 0.0
    %87 = vmatprep.subr.mxu0 0.0
    %88 = vmatpush1.xpose.msra.mxu0 0.0
    %89 = vmatprep.subr.mxu0 0.0
    %90 = vmatpush1.xpose.msra.mxu0 0.0
    %91 = vmatprep.subr.mxu0 0.0
    %92 = vmatpush1.xpose.msra.mxu0 0.0
    %93 = vmatprep.subr.mxu0 0.0
    %94 = vmatpush1.xpose.msra.mxu0 0.0
    %95 = vmatprep.subr.mxu0 0.0
    %96 = vmatpush1.xpose.msra.mxu0 0.0
    %97 = vmatprep.subr.mxu0 0.0
    %98 = vmatpush1.xpose.msra.mxu0 0.0
    %99 = vmatprep.subr.mxu0 0.0
    %100 = vmatpush1.xpose.msra.mxu0 0.0
    %101 = vmatprep.subr.mxu0 0.0
    %102 = vmatpush1.xpose.msra.mxu0 0.0
    %103 = vmatprep.subr.mxu0 0.0
    %104 = vmatpush1.xpose.msra.mxu0 0.0
    %105 = vmatprep.subr.mxu0 0.0
    %106 = vmatpush1.xpose.msra.mxu0 0.0
    %107 = vmatprep.subr.mxu0 0.0
    %108 = vmatpush1.xpose.msra.mxu0 0.0
    %109 = vmatprep.subr.mxu0 0.0
    %110 = vmatpush1.xpose.msra.mxu0 0.0
    %111 = vmatprep.subr.mxu0 0.0
    %112 = vmatpush1.xpose.msra.mxu0 0.0
    %113 = vmatprep.subr.mxu0 0.0
    %114 = vmatpush1.xpose.msra.mxu0 0.0
    %115 = vmatprep.subr.mxu0 0.0
    %116 = vmatpush1.xpose.msra.mxu0 0.0
    %117 = vmatprep.subr.mxu0 0.0
    %118 = vmatpush1.xpose.msra.mxu0 0.0
    %119 = vmatprep.subr.mxu0 0.0
    %120 = vmatpush1.xpose.msra.mxu0 0.0
    %121 = vmatprep.subr.mxu0 0.0
    %122 = vmatpush1.xpose.msra.mxu0 0.0
    %123 = vmatprep.subr.mxu0 0.0
    %124 = vmatpush1.xpose.msra.mxu0 0.0
    %125 = vmatprep.subr.mxu0 0.0
    %126 = vmatpush1.xpose.msra.mxu0 0.0
    %127 = vmatprep.subr.mxu0 0.0
    %128 = vmatpush1.xpose.msra.mxu0 0.0
    %129 = vmatprep.subr.mxu0 0.0
    %130 = vmatpush1.xpose.msra.mxu0 0.0
    %131 = vmatprep.subr.mxu0 0.0
    %132 = vmatpush1.xpose.msra.mxu0 0.0
    %133 = vmatprep.subr.mxu0 0.0
    %134 = vmatpush1.xpose.msra.mxu0 0.0
    %135 = vmatprep.subr.mxu0 0.0
    %136 = vmatpush1.xpose.msra.mxu0 0.0
    %137 = vmatprep.mubr.f32.mxu0 0.0
    %138 = vmatmul.mubr.f32.gmra.mrb[0].mxu0 %v68
    %v139 = vpop.f32.mrb[0].mxu0
    %v140 = vadd.f32 0.0, %v139
    %v141 = vpop.f32.mrb[0].mxu0
    %142 = vdwg.mxu0
    %v143 = vadd.f32 %v65, %v140
    %vm144 = vcmask 64512
    %145 = vst.msk [vmem:[#allocation2] sm:$0xff] %vm144, %v143
    %v146 = vld [vmem:[#allocation3] sm:$0xff]
    %v147 = vmul.f32 %v63, %v63
    %v148 = vsel %vm66, %v147, 0.0
    %149 = vadd.xlane.f32.xlu0 %v148
    %v150 = vpop.xlane.xlu0 %149
    %v151 = vadd.f32 %v146, %v150
    %vm152 = vcmask 7168
    %153 = vst.msk [vmem:[#allocation3] sm:$0xff] %vm152, %v151
    %v154 = vld [vmem:[#allocation4] sm:$0x1]
    %v155 = vmul.f32 %v64, %v64
    %v157 = vsel %vm66, 1.0, 0
    %v160 = vsel %vm66, %v155, 0
    %162 = vmatprep.subr.mxu0 0.0
    %163 = vmatpush1.xpose.msra.mxu0 %v160
    %164 = vmatprep.subr.mxu0 0.0
    %165 = vmatpush1.xpose.msra.mxu0 0.0
    %166 = vmatprep.subr.mxu0 0.0
    %167 = vmatpush1.xpose.msra.mxu0 0.0
    %168 = vmatprep.subr.mxu0 0.0
    %169 = vmatpush1.xpose.msra.mxu0 0.0
    %170 = vmatprep.subr.mxu0 0.0
    %171 = vmatpush1.xpose.msra.mxu0 0.0
    %172 = vmatprep.subr.mxu0 0.0
    %173 = vmatpush1.xpose.msra.mxu0 0.0
    %174 = vmatprep.subr.mxu0 0.0
    %175 = vmatpush1.xpose.msra.mxu0 0.0
    %176 = vmatprep.subr.mxu0 0.0
    %177 = vmatpush1.xpose.msra.mxu0 0.0
    %178 = vmatprep.subr.mxu0 0.0
    %179 = vmatpush1.xpose.msra.mxu0 0.0
    %180 = vmatprep.subr.mxu0 0.0
    %181 = vmatpush1.xpose.msra.mxu0 0.0
    %182 = vmatprep.subr.mxu0 0.0
    %183 = vmatpush1.xpose.msra.mxu0 0.0
    %184 = vmatprep.subr.mxu0 0.0
    %185 = vmatpush1.xpose.msra.mxu0 0.0
    %186 = vmatprep.subr.mxu0 0.0
    %187 = vmatpush1.xpose.msra.mxu0 0.0
    %188 = vmatprep.subr.mxu0 0.0
    %189 = vmatpush1.xpose.msra.mxu0 0.0
    %190 = vmatprep.subr.mxu0 0.0
    %191 = vmatpush1.xpose.msra.mxu0 0.0
    %192 = vmatprep.subr.mxu0 0.0
    %193 = vmatpush1.xpose.msra.mxu0 0.0
    %194 = vmatprep.subr.mxu0 0.0
    %195 = vmatpush1.xpose.msra.mxu0 0.0
    %196 = vmatprep.subr.mxu0 0.0
    %197 = vmatpush1.xpose.msra.mxu0 0.0
    %198 = vmatprep.subr.mxu0 0.0
    %199 = vmatpush1.xpose.msra.mxu0 0.0
    %200 = vmatprep.subr.mxu0 0.0
    %201 = vmatpush1.xpose.msra.mxu0 0.0
    %202 = vmatprep.subr.mxu0 0.0
    %203 = vmatpush1.xpose.msra.mxu0 0.0
    %204 = vmatprep.subr.mxu0 0.0
    %205 = vmatpush1.xpose.msra.mxu0 0.0
    %206 = vmatprep.subr.mxu0 0.0
    %207 = vmatpush1.xpose.msra.mxu0 0.0
    %208 = vmatprep.subr.mxu0 0.0
    %209 = vmatpush1.xpose.msra.mxu0 0.0
    %210 = vmatprep.subr.mxu0 0.0
    %211 = vmatpush1.xpose.msra.mxu0 0.0
    %212 = vmatprep.subr.mxu0 0.0
    %213 = vmatpush1.xpose.msra.mxu0 0.0
    %214 = vmatprep.subr.mxu0 0.0
    %215 = vmatpush1.xpose.msra.mxu0 0.0
    %216 = vmatprep.subr.mxu0 0.0
    %217 = vmatpush1.xpose.msra.mxu0 0.0
    %218 = vmatprep.subr.mxu0 0.0
    %219 = vmatpush1.xpose.msra.mxu0 0.0
    %220 = vmatprep.subr.mxu0 0.0
    %221 = vmatpush1.xpose.msra.mxu0 0.0
    %222 = vmatprep.subr.mxu0 0.0
    %223 = vmatpush1.xpose.msra.mxu0 0.0
    %224 = vmatprep.subr.mxu0 0.0
    %225 = vmatpush1.xpose.msra.mxu0 0.0
    %226 = vmatprep.mubr.f32.mxu0 0.0
    %227 = vmatmul.mubr.f32.gmra.mrb[0].mxu0 %v157
    %v228 = vpop.f32.mrb[0].mxu0
    %v229 = vadd.f32 0.0, %v228
    %v230 = vpop.f32.mrb[0].mxu0
    %231 = vdwg.mxu0
    %v232 = vadd.f32 %v154, %v229
    %vm233 = vcmask 57344
    %234 = vst.msk [vmem:[#allocation4] sm:$0x1] %vm233, %v232
    %v235 = vld [vmem:[#allocation12] sm:$0xff]
    %v236 = vld [vmem:[#allocation5] sm:$0xff]
    %v238 = vsel %vm66, %v235, 0
    %240 = vmatprep.subr.mxu0 0.0
    %241 = vmatpush1.xpose.msra.mxu0 %v238
    %242 = vmatprep.subr.mxu0 0.0
    %243 = vmatpush1.xpose.msra.mxu0 0.0
    %244 = vmatprep.subr.mxu0 0.0
    %245 = vmatpush1.xpose.msra.mxu0 0.0
    %246 = vmatprep.subr.mxu0 0.0
    %247 = vmatpush1.xpose.msra.mxu0 0.0
    %248 = vmatprep.subr.mxu0 0.0
    %249 = vmatpush1.xpose.msra.mxu0 0.0
    %250 = vmatprep.subr.mxu0 0.0
    %251 = vmatpush1.xpose.msra.mxu0 0.0
    %252 = vmatprep.subr.mxu0 0.0
    %253 = vmatpush1.xpose.msra.mxu0 0.0
    %254 = vmatprep.subr.mxu0 0.0
    %255 = vmatpush1.xpose.msra.mxu0 0.0
    %256 = vmatprep.subr.mxu0 0.0
    %257 = vmatpush1.xpose.msra.mxu0 0.0
    %258 = vmatprep.subr.mxu0 0.0
    %259 = vmatpush1.xpose.msra.mxu0 0.0
    %260 = vmatprep.subr.mxu0 0.0
    %261 = vmatpush1.xpose.msra.mxu0 0.0
    %262 = vmatprep.subr.mxu0 0.0
    %263 = vmatpush1.xpose.msra.mxu0 0.0
    %264 = vmatprep.subr.mxu0 0.0
    %265 = vmatpush1.xpose.msra.mxu0 0.0
    %266 = vmatprep.subr.mxu0 0.0
    %267 = vmatpush1.xpose.msra.mxu0 0.0
    %268 = vmatprep.subr.mxu0 0.0
    %269 = vmatpush1.xpose.msra.mxu0 0.0
    %270 = vmatprep.subr.mxu0 0.0
    %271 = vmatpush1.xpose.msra.mxu0 0.0
    %272 = vmatprep.subr.mxu0 0.0
    %273 = vmatpush1.xpose.msra.mxu0 0.0
    %274 = vmatprep.subr.mxu0 0.0
    %275 = vmatpush1.xpose.msra.mxu0 0.0
    %276 = vmatprep.subr.mxu0 0.0
    %277 = vmatpush1.xpose.msra.mxu0 0.0
    %278 = vmatprep.subr.mxu0 0.0
    %279 = vmatpush1.xpose.msra.mxu0 0.0
    %280 = vmatprep.subr.mxu0 0.0
    %281 = vmatpush1.xpose.msra.mxu0 0.0
    %282 = vmatprep.subr.mxu0 0.0
    %283 = vmatpush1.xpose.msra.mxu0 0.0
    %284 = vmatprep.subr.mxu0 0.0
    %285 = vmatpush1.xpose.msra.mxu0 0.0
    %286 = vmatprep.subr.mxu0 0.0
    %287 = vmatpush1.xpose.msra.mxu0 0.0
    %288 = vmatprep.subr.mxu0 0.0
    %289 = vmatpush1.xpose.msra.mxu0 0.0
    %290 = vmatprep.subr.mxu0 0.0
    %291 = vmatpush1.xpose.msra.mxu0 0.0
    %292 = vmatprep.subr.mxu0 0.0
    %293 = vmatpush1.xpose.msra.mxu0 0.0
    %294 = vmatprep.subr.mxu0 0.0
    %295 = vmatpush1.xpose.msra.mxu0 0.0
    %296 = vmatprep.subr.mxu0 0.0
    %297 = vmatpush1.xpose.msra.mxu0 0.0
    %298 = vmatprep.subr.mxu0 0.0
    %299 = vmatpush1.xpose.msra.mxu0 0.0
    %300 = vmatprep.subr.mxu0 0.0
    %301 = vmatpush1.xpose.msra.mxu0 0.0
    %302 = vmatprep.subr.mxu0 0.0
    %303 = vmatpush1.xpose.msra.mxu0 0.0
    %304 = vmatprep.mubr.f32.mxu0 0.0
    %305 = vmatmul.mubr.f32.gmra.mrb[0].mxu0 %v68
    %v306 = vpop.f32.mrb[0].mxu0
    %v307 = vadd.f32 0.0, %v306
    %v308 = vpop.f32.mrb[0].mxu0
    %309 = vdwg.mxu0
    %v310 = vadd.f32 %v236, %v307
    %311 = vst.msk [vmem:[#allocation5] sm:$0xff] %vm144, %v310
    %v312 = vld [vmem:[#allocation6] sm:$0x1]
    %v313 = vmul.f32 %v235, %v235
    %v315 = vsel %vm66, %v313, 0
    %317 = vmatprep.subr.mxu0 0.0
    %318 = vmatpush1.xpose.msra.mxu0 %v315
    %319 = vmatprep.subr.mxu0 0.0
    %320 = vmatpush1.xpose.msra.mxu0 0.0
    %321 = vmatprep.subr.mxu0 0.0
    %322 = vmatpush1.xpose.msra.mxu0 0.0
    %323 = vmatprep.subr.mxu0 0.0
    %324 = vmatpush1.xpose.msra.mxu0 0.0
    %325 = vmatprep.subr.mxu0 0.0
    %326 = vmatpush1.xpose.msra.mxu0 0.0
    %327 = vmatprep.subr.mxu0 0.0
    %328 = vmatpush1.xpose.msra.mxu0 0.0
    %329 = vmatprep.subr.mxu0 0.0
    %330 = vmatpush1.xpose.msra.mxu0 0.0
    %331 = vmatprep.subr.mxu0 0.0
    %332 = vmatpush1.xpose.msra.mxu0 0.0
    %333 = vmatprep.subr.mxu0 0.0
    %334 = vmatpush1.xpose.msra.mxu0 0.0
    %335 = vmatprep.subr.mxu0 0.0
    %336 = vmatpush1.xpose.msra.mxu0 0.0
    %337 = vmatprep.subr.mxu0 0.0
    %338 = vmatpush1.xpose.msra.mxu0 0.0
    %339 = vmatprep.subr.mxu0 0.0
    %340 = vmatpush1.xpose.msra.mxu0 0.0
    %341 = vmatprep.subr.mxu0 0.0
    %342 = vmatpush1.xpose.msra.mxu0 0.0
    %343 = vmatprep.subr.mxu0 0.0
    %344 = vmatpush1.xpose.msra.mxu0 0.0
    %345 = vmatprep.subr.mxu0 0.0
    %346 = vmatpush1.xpose.msra.mxu0 0.0
    %347 = vmatprep.subr.mxu0 0.0
    %348 = vmatpush1.xpose.msra.mxu0 0.0
    %349 = vmatprep.subr.mxu0 0.0
    %350 = vmatpush1.xpose.msra.mxu0 0.0
    %351 = vmatprep.subr.mxu0 0.0
    %352 = vmatpush1.xpose.msra.mxu0 0.0
    %353 = vmatprep.subr.mxu0 0.0
    %354 = vmatpush1.xpose.msra.mxu0 0.0
    %355 = vmatprep.subr.mxu0 0.0
    %356 = vmatpush1.xpose.msra.mxu0 0.0
    %357 = vmatprep.subr.mxu0 0.0
    %358 = vmatpush1.xpose.msra.mxu0 0.0
    %359 = vmatprep.subr.mxu0 0.0
    %360 = vmatpush1.xpose.msra.mxu0 0.0
    %361 = vmatprep.subr.mxu0 0.0
    %362 = vmatpush1.xpose.msra.mxu0 0.0
    %363 = vmatprep.subr.mxu0 0.0
    %364 = vmatpush1.xpose.msra.mxu0 0.0
    %365 = vmatprep.subr.mxu0 0.0
    %366 = vmatpush1.xpose.msra.mxu0 0.0
    %367 = vmatprep.subr.mxu0 0.0
    %368 = vmatpush1.xpose.msra.mxu0 0.0
    %369 = vmatprep.subr.mxu0 0.0
    %370 = vmatpush1.xpose.msra.mxu0 0.0
    %371 = vmatprep.subr.mxu0 0.0
    %372 = vmatpush1.xpose.msra.mxu0 0.0
    %373 = vmatprep.subr.mxu0 0.0
    %374 = vmatpush1.xpose.msra.mxu0 0.0
    %375 = vmatprep.subr.mxu0 0.0
    %376 = vmatpush1.xpose.msra.mxu0 0.0
    %377 = vmatprep.subr.mxu0 0.0
    %378 = vmatpush1.xpose.msra.mxu0 0.0
    %379 = vmatprep.subr.mxu0 0.0
    %380 = vmatpush1.xpose.msra.mxu0 0.0
    %381 = vmatprep.mubr.f32.mxu0 0.0
    %382 = vmatmul.mubr.f32.gmra.mrb[0].mxu0 %v157
    %v383 = vpop.f32.mrb[0].mxu0
    %v384 = vadd.f32 0.0, %v383
    %v385 = vpop.f32.mrb[0].mxu0
    %386 = vdwg.mxu0
    %v387 = vadd.f32 %v312, %v384
    %388 = vst.msk [vmem:[#allocation6] sm:$0x1] %vm233, %v387
    // Predicated region
    $region30: #{tpu_custom_call.1} parent=1 // pred_check
      %p389 = pneg %p51
    $region31: #{tpu_custom_call.1} parent=1 // pred_check_branch
      %391 = sbr.rel (%p389) target = $region33
    $region32: #{tpu_custom_call.1} parent=1 // pred_region
      %v392 = vld [vmem:[#allocation3] sm:$0xff]
      %v393 = vld [vmem:[#allocation4] sm:$0x1]
      %395 = vset.pattern.permute.xlu0 0
      %396 = vperm.xlu0 %395, %v392
      %v397 = vpop.permute.xlu0 %396
      %v400 = vlaneseq
      %v401 = vshrl.u32 %v400, 7
      %v402 = vsub.s32 0, %v401
      %v403 = vrot.slane %v393, %v402
      %v405 = vmul.f32 %v397, %v403
      %v406 = vmax.f32 %v405, 1e-16
      %v407 = vrsqrt.pop %v406
      %v408 = vmul.f32 %v407, 20.0
      %v409 = vld [vmem:[#allocation2] sm:$0xff]
      %v410 = vmul.f32 %v409, %v408
      %v411 = vlaneseq
      %v412 = vshrl.u32 %v411, 7
      %v413 = vstv %s50
      %v414 = vadd.s32 %v412, %v413
      %v415 = vlaneseq
      %v416 = vand.u32 %v415, 127
      %vm417 = vcmp.eq.s32.totalorder %v414, %v416
      %v418 = vld [vmem:[#allocation6] sm:$0x1]
      %v420 = vlaneseq
      %v421 = vshrl.u32 %v420, 7
      %v422 = vsub.s32 0, %v421
      %v423 = vrot.slane %v418, %v422
      %v425 = vmul.f32 %v397, %v423
      %v426 = vmax.f32 %v425, 1e-16
      %v427 = vrsqrt.pop %v426
      %v428 = vmul.f32 %v427, 20.0
      %v429 = vld [vmem:[#allocation5] sm:$0xff]
      %v430 = vmul.f32 %v429, %v428
      %v431 = vsel %vm417, 1.0, 0.0
      %v432 = vadd.f32 %v430, %v431
      %v433 = vsel %vm417, %v410, 0.0
      %v434 = vsel %vm144, %v433, 0.0
      %435 = vadd.xlane.f32.xlu0 %v434
      %v436 = vpop.xlane.xlu0 %435
      %v437 = vsel %vm144, %v410, -inf
      %438 = vmax.xlane.f32.xlu0 %v437
      %v439 = vpop.xlane.xlu0 %438
      %v440 = vsel %vm144, %v432, -inf
      %441 = vmax.xlane.f32.xlu0 %v440
      %v442 = vpop.xlane.xlu0 %441
      %v443 = vmax.f32 %v439, %v442
      %v444 = vsub.f32 %v410, %v443
      %v445 = vmul.f32 %v444, 1.442695
      %v446 = vpow.pop %v445
      %v447 = vsel %vm144, %v446, 0.0
      %448 = vadd.xlane.f32.xlu0 %v447
      %v449 = vpop.xlane.xlu0 %448
      %v450 = vsub.f32 %v432, %v443
      %v451 = vmul.f32 %v450, 1.442695
      %v452 = vpow.pop %v451
      %v453 = vsel %vm144, %v452, 0.0
      %454 = vadd.xlane.f32.xlu0 %v453
      %v455 = vpop.xlane.xlu0 %454
      %v456 = vadd.f32 %v449, %v455
      %v457 = vlog2.pop %v456
      %v458 = vmul.f32 %v457, 0.6931472
      %v459 = vadd.f32 %v443, %v458
      %v460 = vsub.f32 %v459, %v436
      %v461 = vrot.slane %v460, 4
      %v462 = vadd.f32 %v460, %v461
      %v463 = vrot.slane %v462, 2
      %v464 = vadd.f32 %v462, %v463
      %v465 = vrot.slane %v464, 1
      %v466 = vadd.f32 %v464, %v465
      %467 = vst [vmem:[#allocation13] sm:$0xff] %v466
    $region33: #{tpu_custom_call.1} parent=1 // pred_fallthru
      _
    // Predicated region
    $region34: #{tpu_custom_call.1} parent=1 // pred_check
      _
    $region35: #{tpu_custom_call.1} parent=1 // pred_check_branch
      %469 = sbr.rel (0) target = $region37
    $region36: #{tpu_custom_call.1} parent=1 // pred_region
      %s471 = ssub.s32 128, 128
      %472 = vsyncadd [#allocation9], %s471
      %s474 = sshll.u32 [#allocation13], 4
      %s475 = int_to_ptr.vmem [resolvable:$true] %s474
      %477 = dma.vmem_to_hbm [thread:$0]  %s475, 128, %s3, [#allocation9]
    $region37: #{tpu_custom_call.1} parent=1 // pred_fallthru
      _
    // Predicated region
    $region38: #{tpu_custom_call.1} parent=1 // pred_check
      _
    $region39: #{tpu_custom_call.1} parent=1 // pred_check_branch
      %479 = sbr.rel (0) target = $region41
    $region40: #{tpu_custom_call.1} parent=1 // pred_region
      %480 = dma.done [#allocation9], 128
    $region41: #{tpu_custom_call.1} parent=1 // pred_fallthru
      _
    %481 = vsyncpa [#allocation8], 1
    %482 = vsyncpa [#allocation11], 1
    %483 = vsyncpa [#allocation9], 1

</llo_original>
